<compile_context>
chip_gen: v7x
topology: tpu7x:2x2x1
jax: 0.10.0
libtpu: 0.0.40
codegen_flags: <defaults>
</compile_context>

<pallas_src>
import functools

import jax
import jax.numpy as jnp
from jax.experimental import pallas as pl
from jax.experimental.pallas import tpu as pltpu

VMEM_LIMIT = 32 * 1024 * 1024  # safe scoped limit on v5e/v6e/v7x


def _pick_block(n, cap, multiple):
    """Largest divisor of n that is <= cap and a multiple of `multiple`;
    falls back to n itself (full-extent blocks are always legal)."""
    cap = min(cap, n)
    for d in range(cap, 0, -1):
        if n % d == 0 and d % multiple == 0:
            return d
    return n


# ----------------------------- Pallas kernels ------------------------------

def _qkv_rope_kernel(x_ref, wn_ref, w_ref, cos_ref, sin_ref, o_ref, xn_sc, *,
                     eps, n_rope_heads):
    """RMSNorm prologue (once per row tile) + one head-column of the merged
    QKV matmul + RoPE on q/k head columns."""
    j = pl.program_id(1)                               # head-column tile index

    @pl.when(j == 0)                                   # norm once, reuse for all j
    def _():
        x = x_ref[...].astype(jnp.float32)
        var = jnp.mean(x * x, axis=-1, keepdims=True)
        xn_sc[...] = (x * jax.lax.rsqrt(var + eps)
                      * wn_ref[...].astype(jnp.float32)).astype(xn_sc.dtype)

    y = jnp.dot(xn_sc[...], w_ref[...], preferred_element_type=jnp.float32)
    d = y.shape[-1]

    @pl.when(j < n_rope_heads)                         # q & k heads: apply RoPE
    def _():
        lane = jax.lax.broadcasted_iota(jnp.int32, y.shape, 1)
        sign = jnp.where(lane < d // 2, -1.0, 1.0)
        rot = pltpu.roll(y, d // 2, 1) * sign          # rotate_half on the XLU
        o_ref[...] = (y * cos_ref[...] + rot * sin_ref[...]).astype(o_ref.dtype)

    @pl.when(j >= n_rope_heads)                        # v heads: passthrough
    def _():
        o_ref[...] = y.astype(o_ref.dtype)


def _flash_attn_kernel(qfirst_ref, q_ref, k_ref, v_ref, o_ref,
                       m_sc, l_sc, acc_sc, *, scale, block_q, block_k,
                       group, head_dim):
    """Online-softmax GQA attention.  Grid is over KV heads; all `group` Q
    heads sharing a KV head are processed against one fetched K/V tile."""
    ki = pl.program_id(2)
    nk = pl.num_programs(2)
    q_start = pl.program_id(1) * block_q
    k_start = ki * block_k

    @pl.when(ki == 0)
    def _():
        m_sc[...] = jnp.full_like(m_sc, -jnp.inf)
        l_sc[...] = jnp.zeros_like(l_sc)
        acc_sc[...] = jnp.zeros_like(acc_sc)

    # Skip KV tiles entirely in the causal future of this Q tile.
    @pl.when(k_start <= q_start + block_q - 1)
    def _():
        q_pos = q_start + jax.lax.broadcasted_iota(jnp.int32, (block_q, block_k), 0)
        k_pos = k_start + jax.lax.broadcasted_iota(jnp.int32, (block_q, block_k), 1)
        # same request (k >= first index of q's request) & causal (k <= q)
        ok = (k_pos <= q_pos) & (k_pos >= qfirst_ref[...])
        k_tile = k_ref[...]
        v_tile = v_ref[...]
        for h in range(group):                         # static unroll over the Q group
            q_h = q_ref[:, h * head_dim:(h + 1) * head_dim]
            s = jax.lax.dot_general(                   # bf16 in, f32 accumulate
                q_h, k_tile, (((1,), (1,)), ((), ())),
                preferred_element_type=jnp.float32) * scale
            s = jnp.where(ok, s, -1e30)
            m_prev = m_sc[h]
            m_new = jnp.maximum(m_prev, jnp.max(s, axis=-1, keepdims=True))
            alpha = jnp.exp(m_prev - m_new)
            p = jnp.where(ok, jnp.exp(s - m_new), 0.0)
            l_sc[h] = alpha * l_sc[h] + jnp.sum(p, axis=-1, keepdims=True)
            acc_sc[h] = alpha * acc_sc[h] + jnp.dot(
                p.astype(v_tile.dtype), v_tile, preferred_element_type=jnp.float32)
            m_sc[h] = m_new

    @pl.when(ki == nk - 1)
    def _():
        for h in range(group):
            o_ref[:, h * head_dim:(h + 1) * head_dim] = (
                acc_sc[h] * pl.reciprocal(l_sc[h], approx=True)
            ).astype(o_ref.dtype)


def _matmul_residual_kernel(a_ref, b_ref, res_ref, o_ref, acc_ref):
    """Tiled matmul with f32 accumulator and fused residual-add epilogue."""
    @pl.when(pl.program_id(2) == 0)
    def _():
        acc_ref[...] = jnp.zeros_like(acc_ref)

    acc_ref[...] += jnp.dot(a_ref[...], b_ref[...],
                            preferred_element_type=jnp.float32)

    @pl.when(pl.program_id(2) == pl.num_programs(2) - 1)
    def _():
        o_ref[...] = (acc_ref[...] + res_ref[...].astype(jnp.float32)
                      ).astype(o_ref.dtype)


def _gate_up_silu_kernel(x_ref, wn_ref, wg_ref, wu_ref, o_ref, xn_sc, *, eps):
    """RMSNorm prologue (once per row tile) + gate & up matmuls + SiLU(gate)*up."""
    @pl.when(pl.program_id(1) == 0)
    def _():
        x = x_ref[...].astype(jnp.float32)
        var = jnp.mean(x * x, axis=-1, keepdims=True)
        xn_sc[...] = (x * jax.lax.rsqrt(var + eps)
                      * wn_ref[...].astype(jnp.float32)).astype(xn_sc.dtype)

    xn = xn_sc[...]
    g = jnp.dot(xn, wg_ref[...], preferred_element_type=jnp.float32)
    u = jnp.dot(xn, wu_ref[...], preferred_element_type=jnp.float32)
    o_ref[...] = (g * jax.nn.sigmoid(g) * u).astype(o_ref.dtype)


def _rmsnorm_kernel(x_ref, w_ref, o_ref, *, eps):
    x = x_ref[...].astype(jnp.float32)
    var = jnp.mean(x * x, axis=-1, keepdims=True)
    o_ref[...] = (x * jax.lax.rsqrt(var + eps) * w_ref[...].astype(jnp.float32)
                  ).astype(o_ref.dtype)


# ------------------------------ call wrappers -------------------------------

def fused_rmsnorm_qkv_rope(x, w_norm, w_qkv, cos, sin, *, eps, n_rope_heads,
                           head_dim, block_m):
    S, H = x.shape
    W = w_qkv.shape[1]
    return pl.pallas_call(
        functools.partial(_qkv_rope_kernel, eps=eps, n_rope_heads=n_rope_heads),
        out_shape=jax.ShapeDtypeStruct((S, W), x.dtype),
        grid=(S // block_m, W // head_dim),
        in_specs=[
            pl.BlockSpec((block_m, H), lambda i, j: (i, 0)),
            pl.BlockSpec((1, H), lambda i, j: (0, 0)),
            pl.BlockSpec((H, head_dim), lambda i, j: (0, j)),
            pl.BlockSpec((block_m, head_dim), lambda i, j: (i, 0)),
            pl.BlockSpec((block_m, head_dim), lambda i, j: (i, 0)),
        ],
        out_specs=pl.BlockSpec((block_m, head_dim), lambda i, j: (i, j)),
        scratch_shapes=[pltpu.VMEM((block_m, H), w_qkv.dtype)],
        compiler_params=pltpu.CompilerParams(
            dimension_semantics=("parallel", "arbitrary"),
            vmem_limit_bytes=VMEM_LIMIT),
    )(x, w_norm, w_qkv, cos, sin)


def flash_attention(qkv, q_first, *, n_heads, n_kv_heads, head_dim, scale,
                    block_q, block_k):
    S = qkv.shape[0]
    group = n_heads // n_kv_heads
    kernel = functools.partial(_flash_attn_kernel, scale=scale,
                               block_q=block_q, block_k=block_k,
                               group=group, head_dim=head_dim)
    return pl.pallas_call(
        kernel,
        out_shape=jax.ShapeDtypeStruct((S, n_heads * head_dim), qkv.dtype),
        grid=(n_kv_heads, S // block_q, S // block_k),
        in_specs=[
            pl.BlockSpec((block_q, 1), lambda g, qi, ki: (qi, 0)),
            # whole Q-head group (lane-dense group*D slab) of the merged qkv
            pl.BlockSpec((block_q, group * head_dim),
                         lambda g, qi, ki: (qi, g)),
            # the single K / V head shared by that group
            pl.BlockSpec((block_k, head_dim),
                         lambda g, qi, ki: (ki, n_heads + g)),
            pl.BlockSpec((block_k, head_dim),
                         lambda g, qi, ki: (ki, n_heads + n_kv_heads + g)),
        ],
        out_specs=pl.BlockSpec((block_q, group * head_dim),
                               lambda g, qi, ki: (qi, g)),
        scratch_shapes=[
            pltpu.VMEM((group, block_q, 1), jnp.float32),
            pltpu.VMEM((group, block_q, 1), jnp.float32),
            pltpu.VMEM((group, block_q, head_dim), jnp.float32),
        ],
        compiler_params=pltpu.CompilerParams(
            dimension_semantics=("parallel", "parallel", "arbitrary"),
            vmem_limit_bytes=VMEM_LIMIT),
    )(q_first, qkv, qkv, qkv)


def matmul_residual(a, b, residual, *, block_m, block_n, block_k):
    M, K = a.shape
    N = b.shape[1]
    return pl.pallas_call(
        _matmul_residual_kernel,
        out_shape=jax.ShapeDtypeStruct((M, N), residual.dtype),
        grid=(M // block_m, N // block_n, K // block_k),
        in_specs=[
            pl.BlockSpec((block_m, block_k), lambda i, j, k: (i, k)),
            pl.BlockSpec((block_k, block_n), lambda i, j, k: (k, j)),
            pl.BlockSpec((block_m, block_n), lambda i, j, k: (i, j)),
        ],
        out_specs=pl.BlockSpec((block_m, block_n), lambda i, j, k: (i, j)),
        scratch_shapes=[pltpu.VMEM((block_m, block_n), jnp.float32)],
        compiler_params=pltpu.CompilerParams(
            dimension_semantics=("parallel", "parallel", "arbitrary"),
            vmem_limit_bytes=VMEM_LIMIT),
    )(a, b, residual)


def fused_rmsnorm_gate_up_silu(x, w_norm, w_gate_up, *, eps, intermediate,
                               block_m, block_n):
    S, H = x.shape
    up_off = intermediate // block_n       # block-column offset of the up slab
    return pl.pallas_call(
        functools.partial(_gate_up_silu_kernel, eps=eps),
        out_shape=jax.ShapeDtypeStruct((S, intermediate), x.dtype),
        grid=(S // block_m, intermediate // block_n),
        in_specs=[
            pl.BlockSpec((block_m, H), lambda i, j: (i, 0)),
            pl.BlockSpec((1, H), lambda i, j: (0, 0)),
            pl.BlockSpec((H, block_n), lambda i, j: (0, j)),            # gate
            pl.BlockSpec((H, block_n), lambda i, j: (0, j + up_off)),   # up
        ],
        out_specs=pl.BlockSpec((block_m, block_n), lambda i, j: (i, j)),
        scratch_shapes=[pltpu.VMEM((block_m, H), w_gate_up.dtype)],
        compiler_params=pltpu.CompilerParams(
            dimension_semantics=("parallel", "arbitrary"),
            vmem_limit_bytes=VMEM_LIMIT),
    )(x, w_norm, w_gate_up, w_gate_up)


def rmsnorm(x, w, *, eps, block_m):
    S, H = x.shape
    return pl.pallas_call(
        functools.partial(_rmsnorm_kernel, eps=eps),
        out_shape=jax.ShapeDtypeStruct((S, H), x.dtype),
        grid=(S // block_m,),
        in_specs=[pl.BlockSpec((block_m, H), lambda i: (i, 0)),
                  pl.BlockSpec((1, H), lambda i: (0, 0))],
        out_specs=pl.BlockSpec((block_m, H), lambda i: (i, 0)),
        compiler_params=pltpu.CompilerParams(
            dimension_semantics=("parallel",), vmem_limit_bytes=VMEM_LIMIT),
    )(x, w)


# --------------------------- model construction ----------------------------

class Config:
    hidden_size = 512
    num_attention_heads = 4
    num_key_value_heads = 2
    head_dim = 128                      # hidden_size // num_attention_heads
    intermediate_size = 1024
    num_hidden_layers = 2
    decoder_start_layer_idx = 0
    decoder_end_layer_idx = 2
    rms_norm_eps = 1e-6
    rope_theta = 10000.0


def init_params(config, key):
    H = config.hidden_size
    nH, nKV, D = (config.num_attention_heads, config.num_key_value_heads,
                  config.head_dim)
    I = config.intermediate_size
    layers = []
    n_layers = config.decoder_end_layer_idx - config.decoder_start_layer_idx
    for _ in range(n_layers):
        key, k1, k2, k3, k4, k5, k6 = jax.random.split(key, 7)
        layers.append(dict(
            input_norm=(1.0 + 0.1 * jax.random.normal(k5, (1, H))).astype(jnp.float32),
            post_norm=(1.0 + 0.1 * jax.random.normal(k6, (1, H))).astype(jnp.float32),
            # merged qkv (default_merge_attn layout): [H, (nH + 2*nKV) * D]
            w_qkv=(0.02 * jax.random.normal(k1, (H, (nH + 2 * nKV) * D))).astype(jnp.bfloat16),
            w_o=(0.02 * jax.random.normal(k2, (nH * D, H))).astype(jnp.bfloat16),
            # merged gate/up (default_merge_mlp layout): [H, 2*I]
            w_gate_up=(0.02 * jax.random.normal(k3, (H, 2 * I))).astype(jnp.bfloat16),
            w_down=(0.02 * jax.random.normal(k4, (I, H))).astype(jnp.bfloat16),
        ))
    return dict(layers=layers, final_norm=jnp.ones((1, H), jnp.float32))


def rotary_embedding(config, position_ids):
    # HFLlamaRotaryEmbedding.forward semantics (attention_scaling == 1.0), f32.
    D = config.head_dim
    inv_freq = 1.0 / (config.rope_theta ** (jnp.arange(0, D, 2, dtype=jnp.float32) / D))
    freqs = position_ids.astype(jnp.float32)[:, None] * inv_freq[None, :]  # [S, D/2]
    emb = jnp.concatenate([freqs, freqs], axis=-1)                          # [S, D]
    return jnp.cos(emb), jnp.sin(emb)


def build_attention_metadata(seq_len_list):
    # build_forward_cache equivalent (no cached kv => positions start at 0).
    pos, first = [], []
    offset = 0
    for s in seq_len_list:
        pos.append(jnp.arange(s, dtype=jnp.int32))
        first.append(jnp.full((s,), offset, dtype=jnp.int32))   # request start idx
        offset += s
    position_ids = jnp.concatenate(pos)
    q_first = jnp.concatenate(first).reshape(-1, 1)             # [S, 1] int32
    return position_ids, q_first


def hf_llama_forward(hidden_states, seq_len_list, params, config):
    S, H = hidden_states.shape
    nH, nKV, D = (config.num_attention_heads, config.num_key_value_heads,
                  config.head_dim)
    I = config.intermediate_size
    eps = config.rms_norm_eps
    scale = 1.0 / (D ** 0.5)

    position_ids, q_first = build_attention_metadata(seq_len_list)
    cos, sin = rotary_embedding(config, position_ids)           # [S, D] f32

    # Tile sizes: biggest divisors that keep blocks (8,128)-aligned and well
    # inside the 32 MiB scoped VMEM limit (re-derive vs 64 MiB VMEM on v7x).
    bm = _pick_block(S, 256, 8)
    bq = bk = bm
    bn_h = _pick_block(H, 512, 128)
    bk_o = _pick_block(nH * D, 512, 128)
    bk_d = _pick_block(I, 512, 128)
    bn_mlp = _pick_block(I, 512, 128)

    x = hidden_states.astype(jnp.bfloat16)
    for layer in params["layers"]:
        # ---- self attention block ----
        qkv = fused_rmsnorm_qkv_rope(
            x, layer["input_norm"], layer["w_qkv"], cos, sin,
            eps=eps, n_rope_heads=nH + nKV, head_dim=D, block_m=bm)
        attn = flash_attention(
            qkv, q_first, n_heads=nH, n_kv_heads=nKV, head_dim=D,
            scale=scale, block_q=bq, block_k=bk)                 # [S, nH*D]
        x = matmul_residual(attn, layer["w_o"], x,
                            block_m=bm, block_n=bn_h, block_k=bk_o)

        # ---- mlp block ----
        h = fused_rmsnorm_gate_up_silu(
            x, layer["post_norm"], layer["w_gate_up"],
            eps=eps, intermediate=I, block_m=bm, block_n=bn_mlp)
        x = matmul_residual(h, layer["w_down"], x,
                            block_m=bm, block_n=bn_h, block_k=bk_d)
        # TODO(synk): KV-cache writeback (CacheManager.set) is stateful
        #             bookkeeping; only the stateless prefill path is done.

    # final norm (decoder_end_layer_idx == num_hidden_layers)
    x = rmsnorm(x, params["final_norm"], eps=eps, block_m=bm)

    # get_last_hidden_states: last token of each request
    last_idx = jnp.asarray(
        [sum(seq_len_list[:i + 1]) - 1 for i in range(len(seq_len_list))],
        dtype=jnp.int32)
    return x[last_idx]


# --------------------------------- main -------------------------------------

if __name__ == "__main__":
    config = Config()
    key = jax.random.PRNGKey(0)
    key, pkey, xkey = jax.random.split(key, 3)

    seq_len_list = [5, 11]             # two requests, total seq = 16
    total_seq = sum(seq_len_list)
    params = init_params(config, pkey)
    hidden_states = jax.random.normal(
        xkey, (total_seq, config.hidden_size), dtype=jnp.float32)

    out = hf_llama_forward(hidden_states, seq_len_list, params, config)
    out = jax.block_until_ready(out)
    assert out.shape == (len(seq_len_list), config.hidden_size)
    assert bool(jnp.all(jnp.isfinite(out.astype(jnp.float32))))
    print("KERNEL_OK")
</pallas_src>

<mosaic_0001>
module attributes {stable_mosaic.version = 11 : i64} {
  func.func @_qkv_rope_kernel(%arg0: i32, %arg1: i32, %arg2: memref<16x512xbf16, #tpu.memory_space<vmem>>, %arg3: memref<1x512xf32, #tpu.memory_space<vmem>>, %arg4: memref<512x128xbf16, #tpu.memory_space<vmem>>, %arg5: memref<16x128xf32, #tpu.memory_space<vmem>>, %arg6: memref<16x128xf32, #tpu.memory_space<vmem>>, %arg7: memref<16x128xbf16, #tpu.memory_space<vmem>>, %arg8: memref<16x512xbf16, #tpu.memory_space<vmem>>) attributes {dimension_semantics = [#tpu.dimension_semantics<parallel>, #tpu.dimension_semantics<arbitrary>], iteration_bounds = array<i64: 1, 8>, scalar_prefetch = 0 : i64, scratch_operands = 1 : i64, tpu.core_type = #tpu.core_type<tc>, window_params = [{transform_indices = @transform_0, window_bounds = array<i64: 16, 512>}, {pipeline_mode = #tpu.pipeline_mode<synchronous>, transform_indices = @transform_1, window_bounds = array<i64: 1, 512>}, {transform_indices = @transform_2, window_bounds = array<i64: 512, 128>}, {transform_indices = @transform_3, window_bounds = array<i64: 16, 128>}, {transform_indices = @transform_4, window_bounds = array<i64: 16, 128>}, {transform_indices = @transform_5, window_bounds = array<i64: 16, 128>}]} {
    %c0_i32 = arith.constant 0 : i32
    %0 = arith.cmpi eq, %arg1, %c0_i32 : i32
    %1 = arith.extui %0 : i1 to i32
    %c0_i32_0 = arith.constant 0 : i32
    %2 = arith.cmpi ne, %1, %c0_i32_0 : i32
    scf.if %2 {
      %c0_7 = arith.constant 0 : index
      %c0_8 = arith.constant 0 : index
      %12 = vector.load %arg2[%c0_7, %c0_8] : memref<16x512xbf16, #tpu.memory_space<vmem>>, vector<16x512xbf16>
      %13 = arith.extf %12 : vector<16x512xbf16> to vector<16x512xf32>
      %14 = arith.mulf %13, %13 : vector<16x512xf32>
      %cst_9 = arith.constant dense<0.000000e+00> : vector<16xf32>
      %15 = vector.multi_reduction <add>, %14, %cst_9 [1] : vector<16x512xf32> to vector<16xf32>
      %16 = vector.shape_cast %15 : vector<16xf32> to vector<16x1xf32>
      %cst_10 = arith.constant 5.120000e+02 : f32
      %17 = vector.broadcast %cst_10 : f32 to vector<16x1xf32>
      %18 = arith.divf %16, %17 : vector<16x1xf32>
      %cst_11 = arith.constant 9.99999997E-7 : f32
      %19 = vector.broadcast %cst_11 : f32 to vector<16x1xf32>
      %20 = arith.addf %18, %19 : vector<16x1xf32>
      %21 = math.rsqrt %20 : vector<16x1xf32>
      %22 = vector.broadcast %21 : vector<16x1xf32> to vector<16x512xf32>
      %23 = arith.mulf %13, %22 : vector<16x512xf32>
      %c0_12 = arith.constant 0 : index
      %c0_13 = arith.constant 0 : index
      %24 = vector.load %arg3[%c0_12, %c0_13] : memref<1x512xf32, #tpu.memory_space<vmem>>, vector<1x512xf32>
      %25 = vector.broadcast %24 : vector<1x512xf32> to vector<16x512xf32>
      %26 = arith.mulf %23, %25 : vector<16x512xf32>
      %27 = arith.truncf %26 : vector<16x512xf32> to vector<16x512xbf16>
      %c0_14 = arith.constant 0 : index
      %c0_15 = arith.constant 0 : index
      %28 = vector.load %arg8[%c0_14, %c0_15] : memref<16x512xbf16, #tpu.memory_space<vmem>>, vector<16x512xbf16>
      tpu.vector_store %arg8[%c0_14, %c0_15], %27 {strides = array<i32>} : memref<16x512xbf16, #tpu.memory_space<vmem>>, vector<16x512xbf16>,
    } else {
    }
    %c0 = arith.constant 0 : index
    %c0_1 = arith.constant 0 : index
    %3 = vector.load %arg8[%c0, %c0_1] : memref<16x512xbf16, #tpu.memory_space<vmem>>, vector<16x512xbf16>
    %c0_2 = arith.constant 0 : index
    %c0_3 = arith.constant 0 : index
    %4 = vector.load %arg4[%c0_2, %c0_3] : memref<512x128xbf16, #tpu.memory_space<vmem>>, vector<512x128xbf16>
    %cst = arith.constant dense<0.000000e+00> : vector<16x128xf32>
    %5 = tpu.matmul %3, %4, %cst {dimension_numbers = #tpu.dot_dimension_numbers<[1], [0], [0], [1], [0, 0, 1, 1], [], []>} : vector<16x512xbf16>, vector<512x128xbf16>, vector<16x128xf32> -> vector<16x128xf32>
    %c6_i32 = arith.constant 6 : i32
    %6 = arith.cmpi slt, %arg1, %c6_i32 : i32
    %7 = arith.extui %6 : i1 to i32
    %c0_i32_4 = arith.constant 0 : i32
    %8 = arith.cmpi ne, %7, %c0_i32_4 : i32
    scf.if %8 {
      %12 = tpu.iota {dimensions = array<i32: 1>} : vector<16x128xi32>
      %c64_i32 = arith.constant 64 : i32
      %13 = vector.broadcast %c64_i32 : i32 to vector<16x128xi32>
      %14 = arith.cmpi slt, %12, %13 : vector<16x128xi32>
      %cst_7 = arith.constant -1.000000e+00 : f32
      %cst_8 = arith.constant 1.000000e+00 : f32
      %15 = vector.broadcast %cst_7 : f32 to vector<16x128xf32>
      %16 = vector.broadcast %cst_8 : f32 to vector<16x128xf32>
      %17 = arith.select %14, %15, %16 : vector<16x128xi1>, vector<16x128xf32>
      %c64_i32_9 = arith.constant 64 : i32
      %18 = tpu.dynamic_rotate %5 by %c64_i32_9 dim 1 : vector<16x128xf32>, i32 -> vector<16x128xf32>
      %19 = arith.mulf %18, %17 : vector<16x128xf32>
      %c0_10 = arith.constant 0 : index
      %c0_11 = arith.constant 0 : index
      %20 = vector.load %arg5[%c0_10, %c0_11] : memref<16x128xf32, #tpu.memory_space<vmem>>, vector<16x128xf32>
      %21 = arith.mulf %5, %20 : vector<16x128xf32>
      %c0_12 = arith.constant 0 : index
      %c0_13 = arith.constant 0 : index
      %22 = vector.load %arg6[%c0_12, %c0_13] : memref<16x128xf32, #tpu.memory_space<vmem>>, vector<16x128xf32>
      %23 = arith.mulf %19, %22 : vector<16x128xf32>
      %24 = arith.addf %21, %23 : vector<16x128xf32>
      %25 = arith.truncf %24 : vector<16x128xf32> to vector<16x128xbf16>
      %c0_14 = arith.constant 0 : index
      %c0_15 = arith.constant 0 : index
      %26 = vector.load %arg7[%c0_14, %c0_15] : memref<16x128xbf16, #tpu.memory_space<vmem>>, vector<16x128xbf16>
      tpu.vector_store %arg7[%c0_14, %c0_15], %25 {strides = array<i32>} : memref<16x128xbf16, #tpu.memory_space<vmem>>, vector<16x128xbf16>,
    } else {
    }
    %c6_i32_5 = arith.constant 6 : i32
    %9 = arith.cmpi sge, %arg1, %c6_i32_5 : i32
    %10 = arith.extui %9 : i1 to i32
    %c0_i32_6 = arith.constant 0 : i32
    %11 = arith.cmpi ne, %10, %c0_i32_6 : i32
    scf.if %11 {
      %12 = arith.truncf %5 : vector<16x128xf32> to vector<16x128xbf16>
      %c0_7 = arith.constant 0 : index
      %c0_8 = arith.constant 0 : index
      %13 = vector.load %arg7[%c0_7, %c0_8] : memref<16x128xbf16, #tpu.memory_space<vmem>>, vector<16x128xbf16>
      tpu.vector_store %arg7[%c0_7, %c0_8], %12 {strides = array<i32>} : memref<16x128xbf16, #tpu.memory_space<vmem>>, vector<16x128xbf16>,
    } else {
    }
    return
  }
  func.func @transform_0(%arg0: i32, %arg1: i32) -> (i32, i32) {
    %c0_i32 = arith.constant 0 : i32
    %c0_i32_0 = arith.constant 0 : i32
    return %arg0, %c0_i32 : i32, i32
  }
  func.func @transform_1(%arg0: i32, %arg1: i32) -> (i32, i32) {
    %c0_i32 = arith.constant 0 : i32
    %c0_i32_0 = arith.constant 0 : i32
    %c0_i32_1 = arith.constant 0 : i32
    return %c0_i32, %c0_i32_0 : i32, i32
  }
  func.func @transform_2(%arg0: i32, %arg1: i32) -> (i32, i32) {
    %c0_i32 = arith.constant 0 : i32
    %c0_i32_0 = arith.constant 0 : i32
    return %c0_i32, %arg1 : i32, i32
  }
  func.func @transform_3(%arg0: i32, %arg1: i32) -> (i32, i32) {
    %c0_i32 = arith.constant 0 : i32
    %c0_i32_0 = arith.constant 0 : i32
    return %arg0, %c0_i32 : i32, i32
  }
  func.func @transform_4(%arg0: i32, %arg1: i32) -> (i32, i32) {
    %c0_i32 = arith.constant 0 : i32
    %c0_i32_0 = arith.constant 0 : i32
    return %arg0, %c0_i32 : i32, i32
  }
  func.func @transform_5(%arg0: i32, %arg1: i32) -> (i32, i32) {
    %c0_i32 = arith.constant 0 : i32
    return %arg0, %arg1 : i32, i32
  }
}

</mosaic_0001>

<llo_original>
// kernel: tpu_custom_call.1
$region0: #{tpu_custom_call.1}
  #allocation0 [shape = 'u32[]', space=smem, size = 0x4, offset = 0x4, fixed_abs, tag = 'smem constant byte address 0x4 - core index']
  #allocation1 [shape = 'u32[144,128]{1,0:T(1,128)}', space=vmem, size = 0x12000, scoped, tag = 'internal scratch']
  #allocation2 [shape = 'bf16[16,512]{1,0:T(16,128)(2,1)}', space=vmem, size = 0x4000, scoped, tag = 'scratch operand']
  %s0 = inlined_call_operand.hbm [shape: bf16[16,512], index: 0, kind: input, shape index: {}]
  %s1 = inlined_call_operand.hbm [shape: f32[1,512], index: 1, kind: input, shape index: {}]
  %s2 = inlined_call_operand.hbm [shape: bf16[512,1024], index: 2, kind: input, shape index: {}]
  %s3 = inlined_call_operand.hbm [shape: f32[16,128], index: 3, kind: input, shape index: {}]
  %s4 = inlined_call_operand.hbm [shape: f32[16,128], index: 4, kind: input, shape index: {}]
  %s5 = inlined_call_operand.hbm [shape: bf16[16,1024], index: 5, kind: output, shape index: {}]
  %s6 = sld [smem:[#allocation0]]
  $region85: #{tpu_custom_call.1} parent=0
    _
  %s8 = ssub.s32 1, %s6
  %s9 = scalar_select 0, %s8, %s6
  $region1: #{tpu_custom_call.1} parent=0
    #allocation3 [shape = 'u8[16384]{0}', space=vmem, size = 0x4000, scoped, tag = 'input window, operand 0, single buffered']
    #allocation4 [shape = 's32[2]{0}', space=sflag, size = 0x8, scoped, tag = 'scoped memory for tpu_custom_call.1']
    #allocation5 [shape = 's32[2]{0}', space=sflag, size = 0x8, scoped, tag = 'scoped memory for tpu_custom_call.1']
    #allocation6 [shape = 'u8[2048]{0}', space=vmem, size = 0x800, scoped, tag = 'input window, operand 1, single buffered']
    #allocation7 [shape = 's32[1]{0}', space=sflag, size = 0x4, scoped, tag = 'scoped memory for tpu_custom_call.1']
    #allocation8 [shape = 'u8[262144]{0}', space=vmem, size = 0x40000, scoped, tag = 'input window, operand 2']
    #allocation9 [shape = 'u8[8192]{0}', space=vmem, size = 0x2000, scoped, tag = 'input window, operand 3, single buffered']
    #allocation10 [shape = 'u8[8192]{0}', space=vmem, size = 0x2000, scoped, tag = 'input window, operand 4, single buffered']
    #allocation11 [shape = 's32[1]{0}', space=sflag, size = 0x4, scoped, tag = 'scoped memory for tpu_custom_call.1']
    #allocation12 [shape = 'u8[8192]{0}', space=vmem, size = 0x2000, scoped, tag = 'output window, operand 0']
    %10 = vsyncpa [#allocation4], 0
    %11 = vsyncpa [#allocation7], 0
    %12 = vsyncpa [#allocation11], 0
    %13 = vsyncpa [#allocation5], 0
    %s14 = scalar_lea.sflag [#allocation5], 1
    %15 = vsyncpa %s14, 0
    loop: start=0, step=1, limit=10
    $region2: #{tpu_custom_call.1} parent=1 // loop_pre_header
      _
    $region3: #{tpu_custom_call.1} parent=1 // loop_header
      %s17 = sphi 0, %s21
      %p18 = scmp.ge.s32.totalorder %s17, 10
      %s24 = sphi 0, %s36
      %s25 = sphi 0, %s32
      %s26 = sphi 0, %s24
      %s27 = sphi 0, %s25
      %s28 = sphi 0, %s26
      %s29 = sphi 0, %s27
      %s39 = sphi 0, %s41
      %s42 = sphi 0, %s39
      %s43 = sphi 0, %s42
      %s59 = sphi 0, %s43
      %s63 = sphi 0, %s63
      %s65 = sphi 0, %s63
      %s66 = sphi 0, %s65
      %s80 = sphi 0, %s66
      %s86 = sphi 0, %s88
      %s89 = sphi 0, %s86
      %s90 = sphi 0, %s89
      %s106 = sphi 0, %s90
      %s112 = sphi 0, %s114
      %s115 = sphi 0, %s112
      %s116 = sphi 0, %s115
      %s132 = sphi 0, %s116
      %s138 = sphi 0, %s140
      %s141 = sphi 0, %s138
      %s142 = sphi 0, %s141
      %s158 = sphi 0, %s142
      %s166 = sphi 0, %s168
      %s169 = sphi 0, %s166
      %s170 = sphi 0, %s169
      %s186 = sphi 0, %s170
    $region4: #{tpu_custom_call.1} parent=1 // loop_header_branch
      %20 = sbr.rel (%p18) target = $region8
    $region5: #{tpu_custom_call.1} parent=1 // loop_body
      %s22 = ssub.s32 %s17, 1
      %s23 = ssub.s32 %s17, 2
      %s30 = sadd.s32 1, %s25
      %p31 = scmp.ge.s32.totalorder %s30, 8
      %s32 = scalar_select %p31, 0, %s30
      %s33 = sadd.s32 1, %s24
      %s34 = scalar_select %p31, %s33, %s24
      %p35 = scmp.ge.s32.totalorder %s34, 1
      %s36 = scalar_select %p35, 0, %s34
      %s37 = ssub.s32 %s24, %s36
      %p38 = scmp.eq.s32.totalorder %s37, 0
      %s40 = sadd.s32 %s39, 1
      %s41 = scalar_select %p38, %s39, %s40
      %p44 = pneg %p38
      %p45 = scmp.eq.s32.totalorder %s17, 7
      %p46 = por %p44, %p45
      %p47 = scmp.ne.s32.totalorder %s39, %s42
      %p48 = scmp.eq.s32.totalorder %s17, 0
      %p49 = por %p47, %p48
      %p50 = scmp.ne.s32.totalorder %s39, %s42
      %p51 = scmp.eq.s32.totalorder %s22, 7
      %p52 = por %p50, %p51
      %p53 = scmp.ne.s32.totalorder %s42, %s43
      %p54 = scmp.eq.s32.totalorder %s22, 0
      %p55 = por %p53, %p54
      %p56 = scmp.ne.s32.totalorder %s42, %s43
      %p57 = scmp.eq.s32.totalorder %s23, 7
      %p58 = por %p56, %p57
      %p60 = scmp.ne.s32.totalorder %s43, %s59
      %p61 = scmp.eq.s32.totalorder %s23, 0
      %p62 = por %p60, %p61
      %s64 = sadd.s32 %s63, 1
      %p67 = scmp.eq.s32.totalorder %s17, 7
      %p68 = scmp.ne.s32.totalorder %s63, %s65
      %p69 = scmp.eq.s32.totalorder %s17, 0
      %p70 = por %p68, %p69
      %p71 = scmp.ne.s32.totalorder %s63, %s65
      %p72 = scmp.eq.s32.totalorder %s22, 7
      %p73 = por %p71, %p72
      %p74 = scmp.ne.s32.totalorder %s65, %s66
      %p75 = scmp.eq.s32.totalorder %s22, 0
      %p76 = por %p74, %p75
      %p77 = scmp.ne.s32.totalorder %s65, %s66
      %p78 = scmp.eq.s32.totalorder %s23, 7
      %p79 = por %p77, %p78
      %p81 = scmp.ne.s32.totalorder %s66, %s80
      %p82 = scmp.eq.s32.totalorder %s23, 0
      %p83 = por %p81, %p82
      %s84 = ssub.s32 %s25, %s32
      %p85 = scmp.eq.s32.totalorder %s84, 0
      %s87 = sadd.s32 %s86, 1
      %s88 = scalar_select %p85, %s86, %s87
      %p91 = pneg %p85
      %p92 = scmp.eq.s32.totalorder %s17, 7
      %p93 = por %p91, %p92
      %p94 = scmp.ne.s32.totalorder %s86, %s89
      %p95 = scmp.eq.s32.totalorder %s17, 0
      %p96 = por %p94, %p95
      %p97 = scmp.ne.s32.totalorder %s86, %s89
      %p98 = scmp.eq.s32.totalorder %s22, 7
      %p99 = por %p97, %p98
      %p100 = scmp.ne.s32.totalorder %s89, %s90
      %p101 = scmp.eq.s32.totalorder %s22, 0
      %p102 = por %p100, %p101
      %p103 = scmp.ne.s32.totalorder %s89, %s90
      %p104 = scmp.eq.s32.totalorder %s23, 7
      %p105 = por %p103, %p104
      %p107 = scmp.ne.s32.totalorder %s90, %s106
      %p108 = scmp.eq.s32.totalorder %s23, 0
      %p109 = por %p107, %p108
      %s110 = ssub.s32 %s24, %s36
      %p111 = scmp.eq.s32.totalorder %s110, 0
      %s113 = sadd.s32 %s112, 1
      %s114 = scalar_select %p111, %s112, %s113
      %p117 = pneg %p111
      %p118 = scmp.eq.s32.totalorder %s17, 7
      %p119 = por %p117, %p118
      %p120 = scmp.ne.s32.totalorder %s112, %s115
      %p121 = scmp.eq.s32.totalorder %s17, 0
      %p122 = por %p120, %p121
      %p123 = scmp.ne.s32.totalorder %s112, %s115
      %p124 = scmp.eq.s32.totalorder %s22, 7
      %p125 = por %p123, %p124
      %p126 = scmp.ne.s32.totalorder %s115, %s116
      %p127 = scmp.eq.s32.totalorder %s22, 0
      %p128 = por %p126, %p127
      %p129 = scmp.ne.s32.totalorder %s115, %s116
      %p130 = scmp.eq.s32.totalorder %s23, 7
      %p131 = por %p129, %p130
      %p133 = scmp.ne.s32.totalorder %s116, %s132
      %p134 = scmp.eq.s32.totalorder %s23, 0
      %p135 = por %p133, %p134
      %s136 = ssub.s32 %s24, %s36
      %p137 = scmp.eq.s32.totalorder %s136, 0
      %s139 = sadd.s32 %s138, 1
      %s140 = scalar_select %p137, %s138, %s139
      %p143 = pneg %p137
      %p144 = scmp.eq.s32.totalorder %s17, 7
      %p145 = por %p143, %p144
      %p146 = scmp.ne.s32.totalorder %s138, %s141
      %p147 = scmp.eq.s32.totalorder %s17, 0
      %p148 = por %p146, %p147
      %p149 = scmp.ne.s32.totalorder %s138, %s141
      %p150 = scmp.eq.s32.totalorder %s22, 7
      %p151 = por %p149, %p150
      %p152 = scmp.ne.s32.totalorder %s141, %s142
      %p153 = scmp.eq.s32.totalorder %s22, 0
      %p154 = por %p152, %p153
      %p155 = scmp.ne.s32.totalorder %s141, %s142
      %p156 = scmp.eq.s32.totalorder %s23, 7
      %p157 = por %p155, %p156
      %p159 = scmp.ne.s32.totalorder %s142, %s158
      %p160 = scmp.eq.s32.totalorder %s23, 0
      %p161 = por %p159, %p160
      %s162 = ssub.s32 %s24, %s36
      %s163 = ssub.s32 %s25, %s32
      %s164 = sor.u32 %s162, %s163
      %p165 = scmp.eq.s32.totalorder %s164, 0
      %s167 = sadd.s32 %s166, 1
      %s168 = scalar_select %p165, %s166, %s167
      %p171 = pneg %p165
      %p172 = scmp.eq.s32.totalorder %s17, 7
      %p173 = por %p171, %p172
      %p174 = scmp.ne.s32.totalorder %s166, %s169
      %p175 = scmp.eq.s32.totalorder %s17, 0
      %p176 = por %p174, %p175
      %p177 = scmp.ne.s32.totalorder %s166, %s169
      %p178 = scmp.eq.s32.totalorder %s22, 7
      %p179 = por %p177, %p178
      %p180 = scmp.ne.s32.totalorder %s169, %s170
      %p181 = scmp.eq.s32.totalorder %s22, 0
      %p182 = por %p180, %p181
      %p183 = scmp.ne.s32.totalorder %s169, %s170
      %p184 = scmp.eq.s32.totalorder %s23, 7
      %p185 = por %p183, %p184
      %p187 = scmp.ne.s32.totalorder %s170, %s186
      %p188 = scmp.eq.s32.totalorder %s23, 0
      %p189 = por %p187, %p188
      %p190 = scmp.le.s32.totalorder 1, %s17
      %p191 = scmp.lt.s32.totalorder %s17, 9
      %p192 = pnand %p190, %p191
      %p193 = pneg %p192
      // Predicated region
      $region9: #{tpu_custom_call.1} parent=5 // pred_check
        _
      $region10: #{tpu_custom_call.1} parent=5 // pred_check_branch
        %195 = sbr.rel (%p192) target = $region12
      $region11: #{tpu_custom_call.1} parent=5 // pred_region
        %s196 = ssub.s32 %s17, 1
        // Predicated region
        $region13: #{tpu_custom_call.1} parent=11 // pred_check
          %p197 = pneg %p55
        $region14: #{tpu_custom_call.1} parent=11 // pred_check_branch
          %199 = sbr.rel (%p197) target = $region16
        $region15: #{tpu_custom_call.1} parent=11 // pred_region
          %s200 = smul.u32 2, %s26
          %s202 = ssub.s32 512, 512
          %203 = vsyncadd [#allocation4], %s202
          %s204 = smul.addr %s200, 4
          %s205 = smul.addr %s204, 64
          %s206 = scalar_lea.hbm %s0, %s205
          %s207 = sshll.u32 [#allocation3], 4
          %s208 = int_to_ptr.vmem [resolvable:$true] %s207
          %213 = dma.hbm_to_vmem [thread:$0]  %s206, 512, %s208, [#allocation4], 256, 256, 16
        $region16: #{tpu_custom_call.1} parent=11 // pred_fallthru
          _
        // Predicated region
        $region17: #{tpu_custom_call.1} parent=11 // pred_check
          %p214 = pneg %p76
        $region18: #{tpu_custom_call.1} parent=11 // pred_check_branch
          %216 = sbr.rel (%p214) target = $region20
        $region19: #{tpu_custom_call.1} parent=11 // pred_region
          %s218 = ssub.s32 64, 64
          %219 = vsyncadd [#allocation7], %s218
          %s221 = sshll.u32 [#allocation6], 4
          %s222 = int_to_ptr.vmem [resolvable:$true] %s221
          %224 = dma.hbm_to_vmem [thread:$0]  %s1, 64, %s222, [#allocation7]
        $region20: #{tpu_custom_call.1} parent=11 // pred_fallthru
          _
        // Predicated region
        $region21: #{tpu_custom_call.1} parent=11 // pred_check
          %p225 = pneg %p128
        $region22: #{tpu_custom_call.1} parent=11 // pred_check_branch
          %227 = sbr.rel (%p225) target = $region24
        $region23: #{tpu_custom_call.1} parent=11 // pred_region
          %s228 = smul.u32 2, %s26
          %s230 = ssub.s32 256, 256
          %231 = vsyncadd [#allocation7], %s230
          %s232 = smul.addr %s228, 128
          %s233 = scalar_lea.hbm %s3, %s232
          %s234 = sshll.u32 [#allocation9], 4
          %s235 = int_to_ptr.vmem [resolvable:$true] %s234
          %240 = dma.hbm_to_vmem [thread:$0]  %s233, 256, %s235, [#allocation7], 128, 128, 8
        $region24: #{tpu_custom_call.1} parent=11 // pred_fallthru
          _
        // Predicated region
        $region25: #{tpu_custom_call.1} parent=11 // pred_check
          %p241 = pneg %p154
        $region26: #{tpu_custom_call.1} parent=11 // pred_check_branch
          %243 = sbr.rel (%p241) target = $region28
        $region27: #{tpu_custom_call.1} parent=11 // pred_region
          %s244 = smul.u32 2, %s26
          %s246 = ssub.s32 256, 256
          %247 = vsyncadd [#allocation11], %s246
          %s248 = smul.addr %s244, 128
          %s249 = scalar_lea.hbm %s4, %s248
          %s250 = sshll.u32 [#allocation10], 4
          %s251 = int_to_ptr.vmem [resolvable:$true] %s250
          %256 = dma.hbm_to_vmem [thread:$0]  %s249, 256, %s251, [#allocation11], 128, 128, 8
        $region28: #{tpu_custom_call.1} parent=11 // pred_fallthru
          _
      $region12: #{tpu_custom_call.1} parent=5 // pred_fallthru
        _
      %p257 = scmp.lt.s32.totalorder %s17, 8
      // Predicated region
      $region29: #{tpu_custom_call.1} parent=5 // pred_check
        %p258 = pneg %p257
      $region30: #{tpu_custom_call.1} parent=5 // pred_check_branch
        %260 = sbr.rel (%p258) target = $region32
      $region31: #{tpu_custom_call.1} parent=5 // pred_region
        // Predicated region
        $region33: #{tpu_custom_call.1} parent=31 // pred_check
          %p261 = pneg %p96
        $region34: #{tpu_custom_call.1} parent=31 // pred_check_branch
          %263 = sbr.rel (%p261) target = $region36
        $region35: #{tpu_custom_call.1} parent=31 // pred_region
          %s264 = sand.u32 %s17, 1
          %s265 = scalar_lea.sflag [#allocation4], %s264
          %s266 = sand.u32 %s86, 1
          %s267 = smul.addr %s266, 256
          %s268 = scalar_lea.vmem [#allocation8], %s267
          %s270 = ssub.s32 4096, 4096
          %271 = vsyncadd %s265, %s270
          %s272 = smul.addr %s25, 64
          %s273 = scalar_lea.hbm %s2, %s272
          %s274 = sshll.u32 %s268, 4
          %s275 = int_to_ptr.vmem [resolvable:$true] %s274
          %280 = dma.hbm_to_vmem [thread:$0]  %s273, 4096, %s275, %s265, 512, 64, 4
        $region36: #{tpu_custom_call.1} parent=31 // pred_fallthru
          _
      $region32: #{tpu_custom_call.1} parent=5 // pred_fallthru
        _
      %p281 = scmp.le.s32.totalorder 1, %s17
      %p282 = scmp.lt.s32.totalorder %s17, 9
      %p283 = pnand %p281, %p282
      %p284 = pneg %p283
      // Predicated region
      $region37: #{tpu_custom_call.1} parent=5 // pred_check
        _
      $region38: #{tpu_custom_call.1} parent=5 // pred_check_branch
        %286 = sbr.rel (%p283) target = $region40
      $region39: #{tpu_custom_call.1} parent=5 // pred_region
        %s287 = ssub.s32 %s17, 1
        // Predicated region
        $region41: #{tpu_custom_call.1} parent=39 // pred_check
          %p288 = pneg %p55
        $region42: #{tpu_custom_call.1} parent=39 // pred_check_branch
          %290 = sbr.rel (%p288) target = $region44
        $region43: #{tpu_custom_call.1} parent=39 // pred_region
          %291 = dma.done [#allocation4], 512
        $region44: #{tpu_custom_call.1} parent=39 // pred_fallthru
          _
        // Predicated region
        $region45: #{tpu_custom_call.1} parent=39 // pred_check
          %p292 = pneg %p76
        $region46: #{tpu_custom_call.1} parent=39 // pred_check_branch
          %294 = sbr.rel (%p292) target = $region48
        $region47: #{tpu_custom_call.1} parent=39 // pred_region
          %295 = dma.done [#allocation7], 64
        $region48: #{tpu_custom_call.1} parent=39 // pred_fallthru
          _
        %s296 = sand.u32 %s22, 1
        %s297 = scalar_lea.sflag [#allocation4], %s296
        %s298 = sand.u32 %s89, 1
        %s299 = smul.addr %s298, 256
        %s300 = scalar_lea.vmem [#allocation8], %s299
        // Predicated region
        $region49: #{tpu_custom_call.1} parent=39 // pred_check
          %p301 = pneg %p102
        $region50: #{tpu_custom_call.1} parent=39 // pred_check_branch
          %303 = sbr.rel (%p301) target = $region52
        $region51: #{tpu_custom_call.1} parent=39 // pred_region
          %304 = dma.done %s297, 4096
        $region52: #{tpu_custom_call.1} parent=39 // pred_fallthru
          _
        // Predicated region
        $region53: #{tpu_custom_call.1} parent=39 // pred_check
          %p305 = pneg %p128
        $region54: #{tpu_custom_call.1} parent=39 // pred_check_branch
          %307 = sbr.rel (%p305) target = $region56
        $region55: #{tpu_custom_call.1} parent=39 // pred_region
          %308 = dma.done [#allocation7], 256
        $region56: #{tpu_custom_call.1} parent=39 // pred_fallthru
          _
        // Predicated region
        $region57: #{tpu_custom_call.1} parent=39 // pred_check
          %p309 = pneg %p154
        $region58: #{tpu_custom_call.1} parent=39 // pred_check_branch
          %311 = sbr.rel (%p309) target = $region60
        $region59: #{tpu_custom_call.1} parent=39 // pred_region
          %312 = dma.done [#allocation11], 256
        $region60: #{tpu_custom_call.1} parent=39 // pred_fallthru
          _
        %p313 = pneg %p55
        %p314 = pneg %p52
        %p315 = pneg %p76
        %p316 = pneg %p73
        %s317 = sand.u32 %s22, 1
        %s318 = scalar_lea.sflag [#allocation4], %s317
        %s319 = sand.u32 %s89, 1
        %s320 = smul.addr %s319, 256
        %s321 = scalar_lea.vmem [#allocation8], %s320
        %p322 = pneg %p102
        %p323 = pneg %p99
        %p324 = pneg %p128
        %p325 = pneg %p125
        %p326 = pneg %p154
        %p327 = pneg %p151
        %p328 = pneg %p182
        %p329 = pneg %p179
        %s330 = sand.u32 %s169, 1
        %s331 = scalar_lea.sflag [#allocation5], %s330
        %s332 = sand.u32 %s169, 1
        %s333 = smul.addr %s332, 8
        %s334 = scalar_lea.vmem [#allocation12], %s333
        %s335 = smul.u32 2, %s26
        %s336 = smul.u32 2, %s26
        %s337 = smul.u32 2, %s26
        %s338 = smul.u32 2, %s26
        %p340 = scmp.eq.s32.totalorder %s27, 0
        // Predicated region
        $region61: #{tpu_custom_call.1} parent=39 // pred_check
          %p341 = pneg %p340
        $region62: #{tpu_custom_call.1} parent=39 // pred_check_branch
          %343 = sbr.rel (%p341) target = $region64
        $region63: #{tpu_custom_call.1} parent=39 // pred_region
          %v344 = vld [vmem:[#allocation3] sm:$0xff]
          %v345 = vld [vmem:[#allocation3 + $0x8] sm:$0xff]
          %v346 = vld [vmem:[#allocation3 + $0x10] sm:$0xff]
          %v347 = vld [vmem:[#allocation3 + $0x18] sm:$0xff]
          %v348 = vunpack.c.l.bf16 %v344
          %v349 = vunpack.c.h.bf16 %v344
          %v350 = vunpack.c.l.bf16 %v345
          %v351 = vunpack.c.h.bf16 %v345
          %v352 = vunpack.c.l.bf16 %v346
          %v353 = vunpack.c.h.bf16 %v346
          %v354 = vunpack.c.l.bf16 %v347
          %v355 = vunpack.c.h.bf16 %v347
          %v356 = vmul.f32 %v348, %v348
          %v357 = vmul.f32 %v349, %v349
          %v358 = vmul.f32 %v350, %v350
          %v359 = vmul.f32 %v351, %v351
          %v360 = vmul.f32 %v352, %v352
          %v361 = vmul.f32 %v353, %v353
          %v362 = vmul.f32 %v354, %v354
          %v363 = vmul.f32 %v355, %v355
          %v364 = vadd.f32 %v356, %v357
          %v365 = vadd.f32 %v364, %v358
          %v366 = vadd.f32 %v365, %v359
          %367 = vadd.xlane.f32.xlu0 %v366
          %v368 = vpop.xlane.xlu0 %367
          %v369 = vadd.f32 %v360, %v361
          %v370 = vadd.f32 %v369, %v362
          %v371 = vadd.f32 %v370, %v363
          %372 = vadd.xlane.f32.xlu0 %v371
          %v373 = vpop.xlane.xlu0 %372
          %v374 = vrcp.pop 512.0
          %v375 = vmul.f32 %v368, %v374
          %v376 = vmul.f32 %v373, %v374
          %v377 = vadd.f32 %v375, 1e-06
          %v378 = vadd.f32 %v376, 1e-06
          %v379 = vrsqrt.pop %v377
          %v380 = vrsqrt.pop %v378
          %v381 = vmul.f32 %v348, %v379
          %v382 = vmul.f32 %v349, %v379
          %v383 = vmul.f32 %v350, %v379
          %v384 = vmul.f32 %v351, %v379
          %v385 = vmul.f32 %v352, %v380
          %v386 = vmul.f32 %v353, %v380
          %v387 = vmul.f32 %v354, %v380
          %v388 = vmul.f32 %v355, %v380
          %v389 = vld [vmem:[#allocation6] sm:$0xf]
          %v391 = vlaneseq
          %v392 = vshrl.u32 %v391, 7
          %v393 = vsub.s32 0, %v392
          %v394 = vrot.slane %v389, %v393
          %v395 = vlaneseq
          %v396 = vshrl.u32 %v395, 7
          %v397 = vsub.s32 1, %v396
          %v398 = vrot.slane %v389, %v397
          %v399 = vlaneseq
          %v400 = vshrl.u32 %v399, 7
          %v401 = vsub.s32 2, %v400
          %v402 = vrot.slane %v389, %v401
          %v403 = vlaneseq
          %v404 = vshrl.u32 %v403, 7
          %v405 = vsub.s32 3, %v404
          %v406 = vrot.slane %v389, %v405
          %v411 = vmul.f32 %v381, %v394
          %v412 = vmul.f32 %v382, %v398
          %v413 = vmul.f32 %v383, %v402
          %v414 = vmul.f32 %v384, %v406
          %v415 = vmul.f32 %v385, %v394
          %v416 = vmul.f32 %v386, %v398
          %v417 = vmul.f32 %v387, %v402
          %v418 = vmul.f32 %v388, %v406
          %v419 = vpack.c.bf16 %v415, %v411
          %v420 = vpack.c.bf16 %v416, %v412
          %v421 = vpack.c.bf16 %v417, %v413
          %v422 = vpack.c.bf16 %v418, %v414
          %423 = vst [vmem:[#allocation2] sm:$0xff] %v419
          %424 = vst [vmem:[#allocation2 + $0x8] sm:$0xff] %v420
          %425 = vst [vmem:[#allocation2 + $0x10] sm:$0xff] %v421
          %426 = vst [vmem:[#allocation2 + $0x18] sm:$0xff] %v422
        $region64: #{tpu_custom_call.1} parent=39 // pred_fallthru
          _
        %v427 = vld [vmem:[#allocation2] sm:$0xff]
        %v428 = vld [vmem:[#allocation2 + $0x8] sm:$0xff]
        %v429 = vld [vmem:[#allocation2 + $0x10] sm:$0xff]
        %v430 = vld [vmem:[#allocation2 + $0x18] sm:$0xff]
        %v431 = vld [vmem:[%s300] sm:$0xf]
        %v432 = vld [vmem:[%s300 + $0x4] sm:$0xf]
        %v433 = vld [vmem:[%s300 + $0x8] sm:$0xf]
        %v434 = vld [vmem:[%s300 + $0xc] sm:$0xf]
        %v435 = vld [vmem:[%s300 + $0x10] sm:$0xf]
        %v436 = vld [vmem:[%s300 + $0x14] sm:$0xf]
        %v437 = vld [vmem:[%s300 + $0x18] sm:$0xf]
        %v438 = vld [vmem:[%s300 + $0x1c] sm:$0xf]
        %v439 = vld [vmem:[%s300 + $0x20] sm:$0xf]
        %v440 = vld [vmem:[%s300 + $0x24] sm:$0xf]
        %v441 = vld [vmem:[%s300 + $0x28] sm:$0xf]
        %v442 = vld [vmem:[%s300 + $0x2c] sm:$0xf]
        %v443 = vld [vmem:[%s300 + $0x30] sm:$0xf]
        %v444 = vld [vmem:[%s300 + $0x34] sm:$0xf]
        %v445 = vld [vmem:[%s300 + $0x38] sm:$0xf]
        %v446 = vld [vmem:[%s300 + $0x3c] sm:$0xf]
        %v447 = vld [vmem:[%s300 + $0x40] sm:$0xf]
        %v448 = vld [vmem:[%s300 + $0x44] sm:$0xf]
        %v449 = vld [vmem:[%s300 + $0x48] sm:$0xf]
        %v450 = vld [vmem:[%s300 + $0x4c] sm:$0xf]
        %v451 = vld [vmem:[%s300 + $0x50] sm:$0xf]
        %v452 = vld [vmem:[%s300 + $0x54] sm:$0xf]
        %v453 = vld [vmem:[%s300 + $0x58] sm:$0xf]
        %v454 = vld [vmem:[%s300 + $0x5c] sm:$0xf]
        %v455 = vld [vmem:[%s300 + $0x60] sm:$0xf]
        %v456 = vld [vmem:[%s300 + $0x64] sm:$0xf]
        %v457 = vld [vmem:[%s300 + $0x68] sm:$0xf]
        %v458 = vld [vmem:[%s300 + $0x6c] sm:$0xf]
        %v459 = vld [vmem:[%s300 + $0x70] sm:$0xf]
        %v460 = vld [vmem:[%s300 + $0x74] sm:$0xf]
        %v461 = vld [vmem:[%s300 + $0x78] sm:$0xf]
        %v462 = vld [vmem:[%s300 + $0x7c] sm:$0xf]
        %v463 = vld [vmem:[%s300 + $0x80] sm:$0xf]
        %v464 = vld [vmem:[%s300 + $0x84] sm:$0xf]
        %v465 = vld [vmem:[%s300 + $0x88] sm:$0xf]
        %v466 = vld [vmem:[%s300 + $0x8c] sm:$0xf]
        %v467 = vld [vmem:[%s300 + $0x90] sm:$0xf]
        %v468 = vld [vmem:[%s300 + $0x94] sm:$0xf]
        %v469 = vld [vmem:[%s300 + $0x98] sm:$0xf]
        %v470 = vld [vmem:[%s300 + $0x9c] sm:$0xf]
        %v471 = vld [vmem:[%s300 + $0xa0] sm:$0xf]
        %v472 = vld [vmem:[%s300 + $0xa4] sm:$0xf]
        %v473 = vld [vmem:[%s300 + $0xa8] sm:$0xf]
        %v474 = vld [vmem:[%s300 + $0xac] sm:$0xf]
        %v475 = vld [vmem:[%s300 + $0xb0] sm:$0xf]
        %v476 = vld [vmem:[%s300 + $0xb4] sm:$0xf]
        %v477 = vld [vmem:[%s300 + $0xb8] sm:$0xf]
        %v478 = vld [vmem:[%s300 + $0xbc] sm:$0xf]
        %v479 = vld [vmem:[%s300 + $0xc0] sm:$0xf]
        %v480 = vld [vmem:[%s300 + $0xc4] sm:$0xf]
        %v481 = vld [vmem:[%s300 + $0xc8] sm:$0xf]
        %v482 = vld [vmem:[%s300 + $0xcc] sm:$0xf]
        %v483 = vld [vmem:[%s300 + $0xd0] sm:$0xf]
        %v484 = vld [vmem:[%s300 + $0xd4] sm:$0xf]
        %v485 = vld [vmem:[%s300 + $0xd8] sm:$0xf]
        %v486 = vld [vmem:[%s300 + $0xdc] sm:$0xf]
        %v487 = vld [vmem:[%s300 + $0xe0] sm:$0xf]
        %v488 = vld [vmem:[%s300 + $0xe4] sm:$0xf]
        %v489 = vld [vmem:[%s300 + $0xe8] sm:$0xf]
        %v490 = vld [vmem:[%s300 + $0xec] sm:$0xf]
        %v491 = vld [vmem:[%s300 + $0xf0] sm:$0xf]
        %v492 = vld [vmem:[%s300 + $0xf4] sm:$0xf]
        %v493 = vld [vmem:[%s300 + $0xf8] sm:$0xf]
        %v494 = vld [vmem:[%s300 + $0xfc] sm:$0xf]
        %v559 = vunpack.c.l.b16 %v431
        %v560 = vunpack.c.l.b16 %v432
        %v561 = vunpack.c.l.b16 %v433
        %v562 = vunpack.c.l.b16 %v434
        %v563 = vunpack.c.l.b16 %v435
        %v564 = vunpack.c.l.b16 %v436
        %v565 = vunpack.c.l.b16 %v437
        %v566 = vunpack.c.l.b16 %v438
        %v567 = vunpack.c.l.b16 %v439
        %v568 = vunpack.c.l.b16 %v440
        %v569 = vunpack.c.l.b16 %v441
        %v570 = vunpack.c.l.b16 %v442
        %v571 = vunpack.c.l.b16 %v443
        %v572 = vunpack.c.l.b16 %v444
        %v573 = vunpack.c.l.b16 %v445
        %v574 = vunpack.c.l.b16 %v446
        %v575 = vunpack.c.l.b16 %v447
        %v576 = vunpack.c.l.b16 %v448
        %v577 = vunpack.c.l.b16 %v449
        %v578 = vunpack.c.l.b16 %v450
        %v579 = vunpack.c.l.b16 %v451
        %v580 = vunpack.c.l.b16 %v452
        %v581 = vunpack.c.l.b16 %v453
        %v582 = vunpack.c.l.b16 %v454
        %v583 = vunpack.c.l.b16 %v455
        %v584 = vunpack.c.l.b16 %v456
        %v585 = vunpack.c.l.b16 %v457
        %v586 = vunpack.c.l.b16 %v458
        %v587 = vunpack.c.l.b16 %v459
        %v588 = vunpack.c.l.b16 %v460
        %v589 = vunpack.c.l.b16 %v461
        %v590 = vunpack.c.l.b16 %v462
        %v591 = vunpack.c.l.b16 %v463
        %v592 = vunpack.c.l.b16 %v464
        %v593 = vunpack.c.l.b16 %v465
        %v594 = vunpack.c.l.b16 %v466
        %v595 = vunpack.c.l.b16 %v467
        %v596 = vunpack.c.l.b16 %v468
        %v597 = vunpack.c.l.b16 %v469
        %v598 = vunpack.c.l.b16 %v470
        %v599 = vunpack.c.l.b16 %v471
        %v600 = vunpack.c.l.b16 %v472
        %v601 = vunpack.c.l.b16 %v473
        %v602 = vunpack.c.l.b16 %v474
        %v603 = vunpack.c.l.b16 %v475
        %v604 = vunpack.c.l.b16 %v476
        %v605 = vunpack.c.l.b16 %v477
        %v606 = vunpack.c.l.b16 %v478
        %v607 = vunpack.c.l.b16 %v479
        %v608 = vunpack.c.l.b16 %v480
        %v609 = vunpack.c.l.b16 %v481
        %v610 = vunpack.c.l.b16 %v482
        %v611 = vunpack.c.l.b16 %v483
        %v612 = vunpack.c.l.b16 %v484
        %v613 = vunpack.c.l.b16 %v485
        %v614 = vunpack.c.l.b16 %v486
        %v615 = vunpack.c.l.b16 %v487
        %v616 = vunpack.c.l.b16 %v488
        %v617 = vunpack.c.l.b16 %v489
        %v618 = vunpack.c.l.b16 %v490
        %v619 = vunpack.c.l.b16 %v491
        %v620 = vunpack.c.l.b16 %v492
        %v621 = vunpack.c.l.b16 %v493
        %v622 = vunpack.c.l.b16 %v494
        %v623 = vpack.c.b16 %v560, %v559
        %v624 = vpack.c.b16 %v562, %v561
        %v625 = vpack.c.b16 %v564, %v563
        %v626 = vpack.c.b16 %v566, %v565
        %v627 = vpack.c.b16 %v568, %v567
        %v628 = vpack.c.b16 %v570, %v569
        %v629 = vpack.c.b16 %v572, %v571
        %v630 = vpack.c.b16 %v574, %v573
        %v631 = vpack.c.b16 %v576, %v575
        %v632 = vpack.c.b16 %v578, %v577
        %v633 = vpack.c.b16 %v580, %v579
        %v634 = vpack.c.b16 %v582, %v581
        %v635 = vpack.c.b16 %v584, %v583
        %v636 = vpack.c.b16 %v586, %v585
        %v637 = vpack.c.b16 %v588, %v587
        %v638 = vpack.c.b16 %v590, %v589
        %v639 = vpack.c.b16 %v592, %v591
        %v640 = vpack.c.b16 %v594, %v593
        %v641 = vpack.c.b16 %v596, %v595
        %v642 = vpack.c.b16 %v598, %v597
        %v643 = vpack.c.b16 %v600, %v599
        %v644 = vpack.c.b16 %v602, %v601
        %v645 = vpack.c.b16 %v604, %v603
        %v646 = vpack.c.b16 %v606, %v605
        %v647 = vpack.c.b16 %v608, %v607
        %v648 = vpack.c.b16 %v610, %v609
        %v649 = vpack.c.b16 %v612, %v611
        %v650 = vpack.c.b16 %v614, %v613
        %v651 = vpack.c.b16 %v616, %v615
        %v652 = vpack.c.b16 %v618, %v617
        %v653 = vpack.c.b16 %v620, %v619
        %v654 = vpack.c.b16 %v622, %v621
        %687 = vmatprep.subr.bf16.mxu0 0
        %688 = vmatpush1.bf16.msra.mxu0 %v623
        %689 = vmatprep.subr.bf16.mxu0 0
        %690 = vmatpush1.bf16.msra.mxu0 %v624
        %691 = vmatprep.subr.bf16.mxu0 0
        %692 = vmatpush1.bf16.msra.mxu0 %v625
        %693 = vmatprep.subr.bf16.mxu0 0
        %694 = vmatpush1.bf16.msra.mxu0 %v626
        %695 = vmatprep.subr.bf16.mxu0 0
        %696 = vmatpush1.bf16.msra.mxu0 %v627
        %697 = vmatprep.subr.bf16.mxu0 0
        %698 = vmatpush1.bf16.msra.mxu0 %v628
        %699 = vmatprep.subr.bf16.mxu0 0
        %700 = vmatpush1.bf16.msra.mxu0 %v629
        %701 = vmatprep.subr.bf16.mxu0 0
        %702 = vmatpush1.bf16.msra.mxu0 %v630
        %703 = vmatprep.subr.bf16.mxu0 0
        %704 = vmatpush1.bf16.msra.mxu0 %v631
        %705 = vmatprep.subr.bf16.mxu0 0
        %706 = vmatpush1.bf16.msra.mxu0 %v632
        %707 = vmatprep.subr.bf16.mxu0 0
        %708 = vmatpush1.bf16.msra.mxu0 %v633
        %709 = vmatprep.subr.bf16.mxu0 0
        %710 = vmatpush1.bf16.msra.mxu0 %v634
        %711 = vmatprep.subr.bf16.mxu0 0
        %712 = vmatpush1.bf16.msra.mxu0 %v635
        %713 = vmatprep.subr.bf16.mxu0 0
        %714 = vmatpush1.bf16.msra.mxu0 %v636
        %715 = vmatprep.subr.bf16.mxu0 0
        %716 = vmatpush1.bf16.msra.mxu0 %v637
        %717 = vmatprep.subr.bf16.mxu0 0
        %718 = vmatpush1.bf16.msra.mxu0 %v638
        %719 = vmatprep.mubr.bf16.mxu0 %v428
        %720 = vmatmul.mubr.bf16.gmra.mrb[0].mxu0 %v427
        %v721 = vpop.f32.mrb[0].mxu0
        %v722 = vadd.f32 0.0, %v721
        %v723 = vpop.f32.mrb[0].mxu0
        %v724 = vpop.f32.mrb[0].mxu0
        %v725 = vadd.f32 0.0, %v724
        %v726 = vpop.f32.mrb[0].mxu0
        %727 = vdwg.mxu0
        %728 = vmatprep.subr.bf16.mxu0 0
        %729 = vmatpush1.bf16.msra.mxu0 %v639
        %730 = vmatprep.subr.bf16.mxu0 0
        %731 = vmatpush1.bf16.msra.mxu0 %v640
        %732 = vmatprep.subr.bf16.mxu0 0
        %733 = vmatpush1.bf16.msra.mxu0 %v641
        %734 = vmatprep.subr.bf16.mxu0 0
        %735 = vmatpush1.bf16.msra.mxu0 %v642
        %736 = vmatprep.subr.bf16.mxu0 0
        %737 = vmatpush1.bf16.msra.mxu0 %v643
        %738 = vmatprep.subr.bf16.mxu0 0
        %739 = vmatpush1.bf16.msra.mxu0 %v644
        %740 = vmatprep.subr.bf16.mxu0 0
        %741 = vmatpush1.bf16.msra.mxu0 %v645
        %742 = vmatprep.subr.bf16.mxu0 0
        %743 = vmatpush1.bf16.msra.mxu0 %v646
        %744 = vmatprep.subr.bf16.mxu0 0
        %745 = vmatpush1.bf16.msra.mxu0 %v647
        %746 = vmatprep.subr.bf16.mxu0 0
        %747 = vmatpush1.bf16.msra.mxu0 %v648
        %748 = vmatprep.subr.bf16.mxu0 0
        %749 = vmatpush1.bf16.msra.mxu0 %v649
        %750 = vmatprep.subr.bf16.mxu0 0
        %751 = vmatpush1.bf16.msra.mxu0 %v650
        %752 = vmatprep.subr.bf16.mxu0 0
        %753 = vmatpush1.bf16.msra.mxu0 %v651
        %754 = vmatprep.subr.bf16.mxu0 0
        %755 = vmatpush1.bf16.msra.mxu0 %v652
        %756 = vmatprep.subr.bf16.mxu0 0
        %757 = vmatpush1.bf16.msra.mxu0 %v653
        %758 = vmatprep.subr.bf16.mxu0 0
        %759 = vmatpush1.bf16.msra.mxu0 %v654
        %760 = vmatprep.mubr.bf16.mxu0 %v430
        %761 = vmatmul.mubr.bf16.gmra.mrb[0].mxu0 %v429
        %v762 = vpop.f32.mrb[0].mxu0
        %v763 = vadd.f32 %v722, %v762
        %v764 = vpop.f32.mrb[0].mxu0
        %v765 = vpop.f32.mrb[0].mxu0
        %v766 = vadd.f32 %v725, %v765
        %v767 = vpop.f32.mrb[0].mxu0
        %768 = vdwg.mxu0
        %p769 = scmp.lt.s32.totalorder %s27, 6
        // Predicated region
        $region65: #{tpu_custom_call.1} parent=39 // pred_check
          %p770 = pneg %p769
        $region66: #{tpu_custom_call.1} parent=39 // pred_check_branch
          %772 = sbr.rel (%p770) target = $region68
        $region67: #{tpu_custom_call.1} parent=39 // pred_region
          %v773 = vlaneseq
          %v774 = vand.u32 %v773, 127
          %vm775 = vcmp.lt.s32.totalorder %v774, 64
          %v776 = vsel %vm775, -1.0, 1.0
          %777 = vrot.lane.b32.xlu0 %v763, 64
          %v778 = vpop.permute.xlu0 %777
          %779 = vrot.lane.b32.xlu0 %v766, 64
          %v780 = vpop.permute.xlu0 %779
          %v781 = vmul.f32 %v778, %v776
          %v782 = vmul.f32 %v780, %v776
          %v783 = vld [vmem:[#allocation9] sm:$0xff]
          %v784 = vld [vmem:[#allocation9 + $0x8] sm:$0xff]
          %v785 = vmul.f32 %v763, %v783
          %v786 = vmul.f32 %v766, %v784
          %v787 = vld [vmem:[#allocation10] sm:$0xff]
          %v788 = vld [vmem:[#allocation10 + $0x8] sm:$0xff]
          %v789 = vmul.f32 %v781, %v787
          %v790 = vmul.f32 %v782, %v788
          %v791 = vadd.f32 %v785, %v789
          %v792 = vadd.f32 %v786, %v790
          %v793 = vpack.c.bf16 %v792, %v791
          %v795 = vunpack.c.l.b16 %v793
          %v796 = vunpack.c.h.b16 %v793
          %v797 = vpack.c.b16 %v795, %v795
          %v798 = vpack.c.b16 %v796, %v796
          %801 = vst [vmem:[%s334] sm:$0xf] %v797
          %802 = vst [vmem:[%s334 + $0x4] sm:$0xf] %v798
        $region68: #{tpu_custom_call.1} parent=39 // pred_fallthru
          _
        %p803 = scmp.ge.s32.totalorder %s27, 6
        // Predicated region
        $region69: #{tpu_custom_call.1} parent=39 // pred_check
          %p804 = pneg %p803
        $region70: #{tpu_custom_call.1} parent=39 // pred_check_branch
          %806 = sbr.rel (%p804) target = $region72
        $region71: #{tpu_custom_call.1} parent=39 // pred_region
          %v807 = vpack.c.bf16 %v766, %v763
          %v809 = vunpack.c.l.b16 %v807
          %v810 = vunpack.c.h.b16 %v807
          %v811 = vpack.c.b16 %v809, %v809
          %v812 = vpack.c.b16 %v810, %v810
          %815 = vst [vmem:[%s334] sm:$0xf] %v811
          %816 = vst [vmem:[%s334 + $0x4] sm:$0xf] %v812
        $region72: #{tpu_custom_call.1} parent=39 // pred_fallthru
          _
        %s817 = sand.u32 %s169, 1
        %s818 = scalar_lea.sflag [#allocation5], %s817
        %s819 = sand.u32 %s169, 1
        %s820 = smul.addr %s819, 8
        %s821 = scalar_lea.vmem [#allocation12], %s820
        // Predicated region
        $region73: #{tpu_custom_call.1} parent=39 // pred_check
          %p822 = pneg %p179
        $region74: #{tpu_custom_call.1} parent=39 // pred_check_branch
          %824 = sbr.rel (%p822) target = $region76
        $region75: #{tpu_custom_call.1} parent=39 // pred_region
          %s825 = smul.u32 2, %s26
          %s827 = ssub.s32 128, 128
          %828 = vsyncadd %s818, %s827
          %s829 = smul.addr %s825, 8
          %s830 = sadd.s32 %s27, %s829
          %s831 = smul.addr %s830, 64
          %s832 = scalar_lea.hbm %s5, %s831
          %s833 = sshll.u32 %s821, 4
          %s834 = int_to_ptr.vmem [resolvable:$true] %s833
          %839 = dma.vmem_to_hbm [thread:$0]  %s834, 128, %s832, %s818, 64, 512, 4
        $region76: #{tpu_custom_call.1} parent=39 // pred_fallthru
          _
      $region40: #{tpu_custom_call.1} parent=5 // pred_fallthru
        _
      %p840 = scmp.le.s32.totalorder 2, %s17
      // Predicated region
      $region77: #{tpu_custom_call.1} parent=5 // pred_check
        %p841 = pneg %p840
      $region78: #{tpu_custom_call.1} parent=5 // pred_check_branch
        %843 = sbr.rel (%p841) target = $region80
      $region79: #{tpu_custom_call.1} parent=5 // pred_region
        %s844 = ssub.s32 %s17, 2
        // Predicated region
        $region81: #{tpu_custom_call.1} parent=79 // pred_check
          %p845 = pneg %p185
        $region82: #{tpu_custom_call.1} parent=79 // pred_check_branch
          %847 = sbr.rel (%p845) target = $region84
        $region83: #{tpu_custom_call.1} parent=79 // pred_region
          %s848 = sand.u32 %s170, 1
          %s849 = scalar_lea.sflag [#allocation5], %s848
          %s850 = sand.u32 %s170, 1
          %s851 = smul.addr %s850, 8
          %s852 = scalar_lea.vmem [#allocation12], %s851
          %853 = dma.done %s849, 128
        $region84: #{tpu_custom_call.1} parent=79 // pred_fallthru
          _
      $region80: #{tpu_custom_call.1} parent=5 // pred_fallthru
        _
    $region6: #{tpu_custom_call.1} parent=1 // loop_footer
      %s21 = sadd.s32 1, %s17
    $region7: #{tpu_custom_call.1} parent=1 // loop_footer_branch
      %16 = sbr.rel target = $region3
    $region8: #{tpu_custom_call.1} parent=1 // loop_exit
      _
    %854 = vsyncpa [#allocation4], 1
    %s855 = scalar_lea.sflag [#allocation4], 1
    %856 = vsyncpa %s855, 1
    %857 = vsyncpa [#allocation7], 1
    %858 = vsyncpa [#allocation11], 1
    %859 = vsyncpa [#allocation5], 1
    %s860 = scalar_lea.sflag [#allocation5], 1
    %861 = vsyncpa %s860, 1

</llo_original>
